<compile_context>
chip_gen: v5e
topology: v5e:2x2
jax: 0.10.0
libtpu: 0.0.40
codegen_flags: <defaults>
</compile_context>

<pallas_src>
import functools

import jax
import jax.numpy as jnp
from jax.experimental import pallas as pl
from jax.experimental.pallas import tpu as pltpu


def _sdf_regress_kernel(num_layers, no_residual, x_ref, *refs):
    """MLP chain on one point-tile.

    x_ref:   (1, C0, T)   input features (points on lanes, channels on sublanes)
    refs:    flattened per-layer params followed by out_ref:
               no_residual / layer 0 : w (Cout, Cin),  b (Cout, 1)
               residual layer i > 0  : w_y (Cout, Cprev), w_f (Cout, C0), b (Cout, 1)
    out_ref: (1, C_out, T)
    """
    out_ref = refs[-1]
    params = refs[:-1]

    x = x_ref[0]            # (C0, T) float32 -- original features for the residual path
    y = x
    idx = 0
    for i in range(num_layers):
        if no_residual or i == 0:
            w, b = params[idx], params[idx + 1]
            idx += 2
            z = jnp.dot(w[...], y, preferred_element_type=jnp.float32) + b[...]
        else:
            # cat([y, x], channel) @ W.T  ==  W_y @ y + W_f @ x  (no in-kernel concat)
            w_y, w_f, b = params[idx], params[idx + 1], params[idx + 2]
            idx += 3
            z = (jnp.dot(w_y[...], y, preferred_element_type=jnp.float32)
                 + jnp.dot(w_f[...], x, preferred_element_type=jnp.float32)
                 + b[...])
        if i != num_layers - 1:
            z = jnp.where(z > 0, z, jnp.float32(0.01) * z)   # F.leaky_relu default slope
        y = z
        # TODO(synk): `last_op` is an arbitrary user callable (applied every layer in
        # the original forward); not translated generically -- last_op=None assumed.

    out_ref[0] = y.astype(out_ref.dtype)


def sdf_regress_forward(x_nchw, weights, biases, *, no_residual=True, tile_hw=8192):
    """Pallas forward pass equivalent to SdfRegress(filter_channels, no_residual).

    x_nchw:  (N, C0, H, W) float32
    weights: list of (Cout_l, Cin_l) float32  (Conv2d 1x1 kernels, squeezed)
    biases:  list of (Cout_l,) float32
    """
    N, C0, H, W = x_nchw.shape
    num_layers = len(weights)
    C_out = weights[-1].shape[0]
    HW = H * W

    # Free reshape: NCHW -> (N, C0, H*W).  No transpose, no extra HBM traffic.
    x = x_nchw.reshape(N, C0, HW)

    if HW <= tile_hw:
        tile_hw = HW            # full extent -> no lane-alignment requirement
        hw_pad = HW
    else:
        tile_hw = max((tile_hw // 128) * 128, 128)   # lane-aligned tile
        hw_pad = -(-HW // tile_hw) * tile_hw
        if hw_pad != HW:
            # Fallback for ragged spatial sizes only (not hit for typical H*W).
            x = jnp.pad(x, ((0, 0), (0, 0), (0, hw_pad - HW)))

    n_tiles = hw_pad // tile_hw
    grid = (N, n_tiles)

    in_specs = [pl.BlockSpec((1, C0, tile_hw), lambda n, t: (n, 0, t))]
    flat_params = []
    flops_per_pt = 0
    for l, (w, b) in enumerate(zip(weights, biases)):
        c_out_l, c_in_l = w.shape
        b2 = b.reshape(-1, 1).astype(jnp.float32)          # (Cout, 1): broadcasts over lanes
        if no_residual or l == 0:
            pieces = [w.astype(jnp.float32), b2]
        else:
            c_prev = c_in_l - C0
            pieces = [w[:, :c_prev].astype(jnp.float32),   # acts on y
                      w[:, c_prev:].astype(jnp.float32),   # acts on original features
                      b2]
        for p in pieces:
            in_specs.append(pl.BlockSpec(p.shape, lambda n, t: (0, 0)))
            flat_params.append(p)
        flops_per_pt += 2 * c_in_l * c_out_l

    out_spec = pl.BlockSpec((1, C_out, tile_hw), lambda n, t: (n, 0, t))

    # Advisory cost estimate: this op is HBM-bandwidth-bound, tell XLA so.
    param_bytes = sum(int(p.size) * p.dtype.itemsize for p in flat_params)
    bytes_accessed = int((x.size + N * hw_pad * C_out) * 4 + param_bytes * N * n_tiles)
    cost = pl.CostEstimate(
        flops=int(flops_per_pt * N * hw_pad),
        transcendentals=0,
        bytes_accessed=bytes_accessed,
    )

    kernel = functools.partial(_sdf_regress_kernel, num_layers, no_residual)
    out = pl.pallas_call(
        kernel,
        out_shape=jax.ShapeDtypeStruct((N, C_out, hw_pad), x_nchw.dtype),
        grid_spec=pltpu.PrefetchScalarGridSpec(
            num_scalar_prefetch=0,
            grid=grid,
            in_specs=in_specs,
            out_specs=out_spec,
        ),
        compiler_params=pltpu.CompilerParams(
            dimension_semantics=("parallel", "parallel")),
        cost_estimate=cost,
    )(x, *flat_params)

    if hw_pad != HW:
        out = out[:, :, :HW]
    return out.reshape(N, C_out, H, W)    # free reshape back to NCHW


def _reference_forward(x_nchw, weights, biases, *, no_residual=True):
    """Plain-JAX reference mirroring the PyTorch forward (leaky_relu slope 0.01)."""
    N, C0, H, W = x_nchw.shape
    x = jnp.transpose(x_nchw, (0, 2, 3, 1)).reshape(-1, C0)
    y = x
    tmpy = x
    L = len(weights)
    for i, (w, b) in enumerate(zip(weights, biases)):
        inp = y if (no_residual or i == 0) else jnp.concatenate([y, tmpy], axis=-1)
        y = inp @ w.T + b[None, :]
        if i != L - 1:
            y = jnp.where(y > 0, y, 0.01 * y)
    C_out = weights[-1].shape[0]
    return y.reshape(N, H, W, C_out).transpose(0, 3, 1, 2)


def make_params(filter_channels, *, no_residual=True, key=None):
    """Deterministic synthetic Conv2d(1x1) parameters (no checkpoint load)."""
    if key is None:
        key = jax.random.PRNGKey(42)
    weights, biases = [], []
    for l in range(len(filter_channels) - 1):
        c_in = filter_channels[l]
        if (not no_residual) and l != 0:
            c_in = filter_channels[l] + filter_channels[0]
        c_out = filter_channels[l + 1]
        key, kw, kb = jax.random.split(key, 3)
        scale = 1.0 / jnp.sqrt(jnp.float32(c_in))
        weights.append(jax.random.uniform(kw, (c_out, c_in), jnp.float32, -scale, scale))
        biases.append(jax.random.uniform(kb, (c_out,), jnp.float32, -scale, scale))
    return weights, biases


if __name__ == "__main__":
    # Small shapes consistent with the module: SdfRegress([4, 32, 32, 1]) on NCHW input.
    filter_channels = [4, 32, 32, 1]
    key = jax.random.PRNGKey(0)
    x = jax.random.normal(key, (2, filter_channels[0], 16, 16), jnp.float32)

    for no_residual in (True, False):
        weights, biases = make_params(filter_channels, no_residual=no_residual)
        out = sdf_regress_forward(x, weights, biases, no_residual=no_residual)
        out = jax.block_until_ready(out)
        ref = _reference_forward(x, weights, biases, no_residual=no_residual)
        assert out.shape == (2, filter_channels[-1], 16, 16), out.shape
        err = float(jnp.max(jnp.abs(out - ref)))
        assert jnp.allclose(out, ref, atol=1e-5, rtol=1e-5), err

    print("KERNEL_OK")
</pallas_src>

<mosaic_0001>
module attributes {stable_mosaic.version = 11 : i64} {
  func.func @_sdf_regress_kernel(%arg0: i32, %arg1: i32, %arg2: memref<1x4x256xf32, #tpu.memory_space<vmem>>, %arg3: memref<32x4xf32, #tpu.memory_space<vmem>>, %arg4: memref<32x1xf32, #tpu.memory_space<vmem>>, %arg5: memref<32x32xf32, #tpu.memory_space<vmem>>, %arg6: memref<32x1xf32, #tpu.memory_space<vmem>>, %arg7: memref<1x32xf32, #tpu.memory_space<vmem>>, %arg8: memref<1x1xf32, #tpu.memory_space<vmem>>, %arg9: memref<1x1x256xf32, #tpu.memory_space<vmem>>) attributes {dimension_semantics = [#tpu.dimension_semantics<parallel>, #tpu.dimension_semantics<parallel>], iteration_bounds = array<i64: 2, 1>, scalar_prefetch = 0 : i64, scratch_operands = 0 : i64, tpu.core_type = #tpu.core_type<tc>, window_params = [{transform_indices = @transform_0, window_bounds = array<i64: 1, 4, 256>}, {pipeline_mode = #tpu.pipeline_mode<synchronous>, transform_indices = @transform_1, window_bounds = array<i64: 32, 4>}, {pipeline_mode = #tpu.pipeline_mode<synchronous>, transform_indices = @transform_2, window_bounds = array<i64: 32, 1>}, {pipeline_mode = #tpu.pipeline_mode<synchronous>, transform_indices = @transform_3, window_bounds = array<i64: 32, 32>}, {pipeline_mode = #tpu.pipeline_mode<synchronous>, transform_indices = @transform_4, window_bounds = array<i64: 32, 1>}, {pipeline_mode = #tpu.pipeline_mode<synchronous>, transform_indices = @transform_5, window_bounds = array<i64: 1, 32>}, {pipeline_mode = #tpu.pipeline_mode<synchronous>, transform_indices = @transform_6, window_bounds = array<i64: 1, 1>}, {transform_indices = @transform_7, window_bounds = array<i64: 1, 1, 256>}]} {
    %c0 = arith.constant 0 : index
    %c0_0 = arith.constant 0 : index
    %c0_1 = arith.constant 0 : index
    %0 = vector.load %arg2[%c0, %c0_0, %c0_1] : memref<1x4x256xf32, #tpu.memory_space<vmem>>, vector<1x4x256xf32>
    %1 = vector.shape_cast %0 : vector<1x4x256xf32> to vector<4x256xf32>
    %c0_2 = arith.constant 0 : index
    %c0_3 = arith.constant 0 : index
    %2 = vector.load %arg3[%c0_2, %c0_3] : memref<32x4xf32, #tpu.memory_space<vmem>>, vector<32x4xf32>
    %cst = arith.constant dense<0.000000e+00> : vector<32x256xf32>
    %3 = tpu.matmul %2, %1, %cst {dimension_numbers = #tpu.dot_dimension_numbers<[1], [0], [0], [1], [0, 0, 1, 1], [], []>} : vector<32x4xf32>, vector<4x256xf32>, vector<32x256xf32> -> vector<32x256xf32>
    %c0_4 = arith.constant 0 : index
    %c0_5 = arith.constant 0 : index
    %4 = vector.load %arg4[%c0_4, %c0_5] : memref<32x1xf32, #tpu.memory_space<vmem>>, vector<32x1xf32>
    %5 = vector.broadcast %4 : vector<32x1xf32> to vector<32x256xf32>
    %6 = arith.addf %3, %5 : vector<32x256xf32>
    %cst_6 = arith.constant 0.000000e+00 : f32
    %7 = vector.broadcast %cst_6 : f32 to vector<32x256xf32>
    %8 = arith.cmpf ogt, %6, %7 : vector<32x256xf32>
    %cst_7 = arith.constant 0.00999999977 : f32
    %9 = vector.broadcast %cst_7 : f32 to vector<32x256xf32>
    %10 = arith.mulf %9, %6 : vector<32x256xf32>
    %11 = arith.select %8, %6, %10 : vector<32x256xi1>, vector<32x256xf32>
    %c0_8 = arith.constant 0 : index
    %c0_9 = arith.constant 0 : index
    %12 = vector.load %arg5[%c0_8, %c0_9] : memref<32x32xf32, #tpu.memory_space<vmem>>, vector<32x32xf32>
    %cst_10 = arith.constant dense<0.000000e+00> : vector<32x256xf32>
    %13 = tpu.matmul %12, %11, %cst_10 {dimension_numbers = #tpu.dot_dimension_numbers<[1], [0], [0], [1], [0, 0, 1, 1], [], []>} : vector<32x32xf32>, vector<32x256xf32>, vector<32x256xf32> -> vector<32x256xf32>
    %c0_11 = arith.constant 0 : index
    %c0_12 = arith.constant 0 : index
    %14 = vector.load %arg6[%c0_11, %c0_12] : memref<32x1xf32, #tpu.memory_space<vmem>>, vector<32x1xf32>
    %15 = vector.broadcast %14 : vector<32x1xf32> to vector<32x256xf32>
    %16 = arith.addf %13, %15 : vector<32x256xf32>
    %cst_13 = arith.constant 0.000000e+00 : f32
    %17 = vector.broadcast %cst_13 : f32 to vector<32x256xf32>
    %18 = arith.cmpf ogt, %16, %17 : vector<32x256xf32>
    %cst_14 = arith.constant 0.00999999977 : f32
    %19 = vector.broadcast %cst_14 : f32 to vector<32x256xf32>
    %20 = arith.mulf %19, %16 : vector<32x256xf32>
    %21 = arith.select %18, %16, %20 : vector<32x256xi1>, vector<32x256xf32>
    %c0_15 = arith.constant 0 : index
    %c0_16 = arith.constant 0 : index
    %22 = vector.load %arg7[%c0_15, %c0_16] : memref<1x32xf32, #tpu.memory_space<vmem>>, vector<1x32xf32>
    %cst_17 = arith.constant dense<0.000000e+00> : vector<1x256xf32>
    %23 = tpu.matmul %22, %21, %cst_17 {dimension_numbers = #tpu.dot_dimension_numbers<[1], [0], [0], [1], [0, 0, 1, 1], [], []>} : vector<1x32xf32>, vector<32x256xf32>, vector<1x256xf32> -> vector<1x256xf32>
    %c0_18 = arith.constant 0 : index
    %c0_19 = arith.constant 0 : index
    %24 = vector.load %arg8[%c0_18, %c0_19] : memref<1x1xf32, #tpu.memory_space<vmem>>, vector<1x1xf32>
    %25 = vector.broadcast %24 : vector<1x1xf32> to vector<1x256xf32>
    %26 = arith.addf %23, %25 : vector<1x256xf32>
    %c0_20 = arith.constant 0 : index
    %c0_21 = arith.constant 0 : index
    %c0_22 = arith.constant 0 : index
    %27 = vector.load %arg9[%c0_20, %c0_21, %c0_22] : memref<1x1x256xf32, #tpu.memory_space<vmem>>, vector<1x1x256xf32>
    %28 = vector.shape_cast %27 : vector<1x1x256xf32> to vector<1x256xf32>
    %29 = vector.shape_cast %26 : vector<1x256xf32> to vector<1x1x256xf32>
    tpu.vector_store %arg9[%c0_20, %c0_21, %c0_22], %29 {strides = array<i32>} : memref<1x1x256xf32, #tpu.memory_space<vmem>>, vector<1x1x256xf32>,
    return
  }
  func.func @transform_0(%arg0: i32, %arg1: i32) -> (i32, i32, i32) {
    %c0_i32 = arith.constant 0 : i32
    %c0_i32_0 = arith.constant 0 : i32
    return %arg0, %c0_i32, %arg1 : i32, i32, i32
  }
  func.func @transform_1(%arg0: i32, %arg1: i32) -> (i32, i32) {
    %c0_i32 = arith.constant 0 : i32
    %c0_i32_0 = arith.constant 0 : i32
    %c0_i32_1 = arith.constant 0 : i32
    return %c0_i32, %c0_i32_0 : i32, i32
  }
  func.func @transform_2(%arg0: i32, %arg1: i32) -> (i32, i32) {
    %c0_i32 = arith.constant 0 : i32
    %c0_i32_0 = arith.constant 0 : i32
    %c0_i32_1 = arith.constant 0 : i32
    return %c0_i32, %c0_i32_0 : i32, i32
  }
  func.func @transform_3(%arg0: i32, %arg1: i32) -> (i32, i32) {
    %c0_i32 = arith.constant 0 : i32
    %c0_i32_0 = arith.constant 0 : i32
    %c0_i32_1 = arith.constant 0 : i32
    return %c0_i32, %c0_i32_0 : i32, i32
  }
  func.func @transform_4(%arg0: i32, %arg1: i32) -> (i32, i32) {
    %c0_i32 = arith.constant 0 : i32
    %c0_i32_0 = arith.constant 0 : i32
    %c0_i32_1 = arith.constant 0 : i32
    return %c0_i32, %c0_i32_0 : i32, i32
  }
  func.func @transform_5(%arg0: i32, %arg1: i32) -> (i32, i32) {
    %c0_i32 = arith.constant 0 : i32
    %c0_i32_0 = arith.constant 0 : i32
    %c0_i32_1 = arith.constant 0 : i32
    return %c0_i32, %c0_i32_0 : i32, i32
  }
  func.func @transform_6(%arg0: i32, %arg1: i32) -> (i32, i32) {
    %c0_i32 = arith.constant 0 : i32
    %c0_i32_0 = arith.constant 0 : i32
    %c0_i32_1 = arith.constant 0 : i32
    return %c0_i32, %c0_i32_0 : i32, i32
  }
  func.func @transform_7(%arg0: i32, %arg1: i32) -> (i32, i32, i32) {
    %c0_i32 = arith.constant 0 : i32
    %c0_i32_0 = arith.constant 0 : i32
    return %arg0, %c0_i32, %arg1 : i32, i32, i32
  }
}

</mosaic_0001>

<llo_original>
// kernel: tpu_custom_call.1
$region0: #{tpu_custom_call.1}
  #allocation0 [shape = 'u32[]', space=smem, size = 0x4, offset = 0x4, fixed_abs, tag = 'smem constant byte address 0x4 - core index']
  #allocation1 [shape = 'u32[72,128]{1,0:T(1,128)}', space=vmem, size = 0x9000, scoped, tag = 'internal scratch']
  #allocation2 [shape = 'f32[1,1]{1,0:T(1,128)S(1)}', space=vmem, size = 0x200, scoped, tag = 'scoped memory for tpu_custom_call.1']
  %s0 = inlined_call_operand.vmem [shape: f32[2,4,256], index: 0, kind: input, shape index: {}]
  %s1 = inlined_call_operand.vmem [shape: f32[32,4], index: 1, kind: input, shape index: {}]
  %s2 = inlined_call_operand.vmem [shape: f32[32,1], index: 2, kind: input, shape index: {}]
  %s3 = inlined_call_operand.vmem [shape: f32[32,32], index: 3, kind: input, shape index: {}]
  %s4 = inlined_call_operand.vmem [shape: f32[32,1], index: 4, kind: input, shape index: {}]
  %s5 = inlined_call_operand.vmem [shape: f32[1,32], index: 5, kind: input, shape index: {}]
  %s6 = inlined_call_operand.<no memory space> [shape: f32[1,1], index: 6, kind: input, shape index: {}]
  %s7 = inlined_call_operand.hbm [shape: f32[2,1,256], index: 7, kind: output, shape index: {}]
  %s8 = sld [smem:[#allocation0]]
  $region61: #{tpu_custom_call.1} parent=0
    _
  %s10 = ssub.s32 1, %s8
  %s11 = scalar_select 0, %s10, %s8
  %v12 = vstv %s6
  %13 = vst [vmem:[#allocation2] sm:$0x1] %v12
  $region1: #{tpu_custom_call.1} parent=0
    #allocation3 [shape = 'u8[2048]{0}', space=vmem, size = 0x800, scoped, tag = 'output window, operand 0']
    #allocation4 [shape = 's32[2]{0}', space=sflag, size = 0x8, scoped, tag = 'scoped memory for tpu_custom_call.1']
    %14 = vsyncpa [#allocation4], 0
    %s15 = scalar_lea.sflag [#allocation4], 1
    %16 = vsyncpa %s15, 0
    loop: start=0, step=1, limit=4
    $region2: #{tpu_custom_call.1} parent=1 // loop_pre_header
      _
    $region3: #{tpu_custom_call.1} parent=1 // loop_header
      %s18 = sphi 0, %s22
      %p19 = scmp.ge.s32.totalorder %s18, 4
      %s25 = sphi 0, %s37
      %s26 = sphi 0, %s33
      %s27 = sphi 0, %s25
      %s28 = sphi 0, %s26
      %s29 = sphi 0, %s27
      %s30 = sphi 0, %s28
      %s42 = sphi 0, %s44
      %s45 = sphi 0, %s42
      %s46 = sphi 0, %s45
      %s62 = sphi 0, %s46
      %s66 = sphi 0, %s66
      %s68 = sphi 0, %s66
      %s69 = sphi 0, %s68
      %s83 = sphi 0, %s69
      %s87 = sphi 0, %s87
      %s89 = sphi 0, %s87
      %s90 = sphi 0, %s89
      %s104 = sphi 0, %s90
      %s108 = sphi 0, %s108
      %s110 = sphi 0, %s108
      %s111 = sphi 0, %s110
      %s125 = sphi 0, %s111
      %s129 = sphi 0, %s129
      %s131 = sphi 0, %s129
      %s132 = sphi 0, %s131
      %s146 = sphi 0, %s132
      %s150 = sphi 0, %s150
      %s152 = sphi 0, %s150
      %s153 = sphi 0, %s152
      %s167 = sphi 0, %s153
      %s171 = sphi 0, %s171
      %s173 = sphi 0, %s171
      %s174 = sphi 0, %s173
      %s188 = sphi 0, %s174
      %s196 = sphi 0, %s198
      %s199 = sphi 0, %s196
      %s200 = sphi 0, %s199
      %s216 = sphi 0, %s200
    $region4: #{tpu_custom_call.1} parent=1 // loop_header_branch
      %21 = sbr.rel (%p19) target = $region8
    $region5: #{tpu_custom_call.1} parent=1 // loop_body
      %s23 = ssub.s32 %s18, 1
      %s24 = ssub.s32 %s18, 2
      %s31 = sadd.s32 1, %s26
      %p32 = scmp.ge.s32.totalorder %s31, 1
      %s33 = scalar_select %p32, 0, %s31
      %s34 = sadd.s32 1, %s25
      %s35 = scalar_select %p32, %s34, %s25
      %p36 = scmp.ge.s32.totalorder %s35, 2
      %s37 = scalar_select %p36, 0, %s35
      %s38 = ssub.s32 %s25, %s37
      %s39 = ssub.s32 %s26, %s33
      %s40 = sor.u32 %s38, %s39
      %p41 = scmp.eq.s32.totalorder %s40, 0
      %s43 = sadd.s32 %s42, 1
      %s44 = scalar_select %p41, %s42, %s43
      %p47 = pneg %p41
      %p48 = scmp.eq.s32.totalorder %s18, 1
      %p49 = por %p47, %p48
      %p50 = scmp.ne.s32.totalorder %s42, %s45
      %p51 = scmp.eq.s32.totalorder %s18, 0
      %p52 = por %p50, %p51
      %p53 = scmp.ne.s32.totalorder %s42, %s45
      %p54 = scmp.eq.s32.totalorder %s23, 1
      %p55 = por %p53, %p54
      %p56 = scmp.ne.s32.totalorder %s45, %s46
      %p57 = scmp.eq.s32.totalorder %s23, 0
      %p58 = por %p56, %p57
      %p59 = scmp.ne.s32.totalorder %s45, %s46
      %p60 = scmp.eq.s32.totalorder %s24, 1
      %p61 = por %p59, %p60
      %p63 = scmp.ne.s32.totalorder %s46, %s62
      %p64 = scmp.eq.s32.totalorder %s24, 0
      %p65 = por %p63, %p64
      %s67 = sadd.s32 %s66, 1
      %p70 = scmp.eq.s32.totalorder %s18, 1
      %p71 = scmp.ne.s32.totalorder %s66, %s68
      %p72 = scmp.eq.s32.totalorder %s18, 0
      %p73 = por %p71, %p72
      %p74 = scmp.ne.s32.totalorder %s66, %s68
      %p75 = scmp.eq.s32.totalorder %s23, 1
      %p76 = por %p74, %p75
      %p77 = scmp.ne.s32.totalorder %s68, %s69
      %p78 = scmp.eq.s32.totalorder %s23, 0
      %p79 = por %p77, %p78
      %p80 = scmp.ne.s32.totalorder %s68, %s69
      %p81 = scmp.eq.s32.totalorder %s24, 1
      %p82 = por %p80, %p81
      %p84 = scmp.ne.s32.totalorder %s69, %s83
      %p85 = scmp.eq.s32.totalorder %s24, 0
      %p86 = por %p84, %p85
      %s88 = sadd.s32 %s87, 1
      %p91 = scmp.eq.s32.totalorder %s18, 1
      %p92 = scmp.ne.s32.totalorder %s87, %s89
      %p93 = scmp.eq.s32.totalorder %s18, 0
      %p94 = por %p92, %p93
      %p95 = scmp.ne.s32.totalorder %s87, %s89
      %p96 = scmp.eq.s32.totalorder %s23, 1
      %p97 = por %p95, %p96
      %p98 = scmp.ne.s32.totalorder %s89, %s90
      %p99 = scmp.eq.s32.totalorder %s23, 0
      %p100 = por %p98, %p99
      %p101 = scmp.ne.s32.totalorder %s89, %s90
      %p102 = scmp.eq.s32.totalorder %s24, 1
      %p103 = por %p101, %p102
      %p105 = scmp.ne.s32.totalorder %s90, %s104
      %p106 = scmp.eq.s32.totalorder %s24, 0
      %p107 = por %p105, %p106
      %s109 = sadd.s32 %s108, 1
      %p112 = scmp.eq.s32.totalorder %s18, 1
      %p113 = scmp.ne.s32.totalorder %s108, %s110
      %p114 = scmp.eq.s32.totalorder %s18, 0
      %p115 = por %p113, %p114
      %p116 = scmp.ne.s32.totalorder %s108, %s110
      %p117 = scmp.eq.s32.totalorder %s23, 1
      %p118 = por %p116, %p117
      %p119 = scmp.ne.s32.totalorder %s110, %s111
      %p120 = scmp.eq.s32.totalorder %s23, 0
      %p121 = por %p119, %p120
      %p122 = scmp.ne.s32.totalorder %s110, %s111
      %p123 = scmp.eq.s32.totalorder %s24, 1
      %p124 = por %p122, %p123
      %p126 = scmp.ne.s32.totalorder %s111, %s125
      %p127 = scmp.eq.s32.totalorder %s24, 0
      %p128 = por %p126, %p127
      %s130 = sadd.s32 %s129, 1
      %p133 = scmp.eq.s32.totalorder %s18, 1
      %p134 = scmp.ne.s32.totalorder %s129, %s131
      %p135 = scmp.eq.s32.totalorder %s18, 0
      %p136 = por %p134, %p135
      %p137 = scmp.ne.s32.totalorder %s129, %s131
      %p138 = scmp.eq.s32.totalorder %s23, 1
      %p139 = por %p137, %p138
      %p140 = scmp.ne.s32.totalorder %s131, %s132
      %p141 = scmp.eq.s32.totalorder %s23, 0
      %p142 = por %p140, %p141
      %p143 = scmp.ne.s32.totalorder %s131, %s132
      %p144 = scmp.eq.s32.totalorder %s24, 1
      %p145 = por %p143, %p144
      %p147 = scmp.ne.s32.totalorder %s132, %s146
      %p148 = scmp.eq.s32.totalorder %s24, 0
      %p149 = por %p147, %p148
      %s151 = sadd.s32 %s150, 1
      %p154 = scmp.eq.s32.totalorder %s18, 1
      %p155 = scmp.ne.s32.totalorder %s150, %s152
      %p156 = scmp.eq.s32.totalorder %s18, 0
      %p157 = por %p155, %p156
      %p158 = scmp.ne.s32.totalorder %s150, %s152
      %p159 = scmp.eq.s32.totalorder %s23, 1
      %p160 = por %p158, %p159
      %p161 = scmp.ne.s32.totalorder %s152, %s153
      %p162 = scmp.eq.s32.totalorder %s23, 0
      %p163 = por %p161, %p162
      %p164 = scmp.ne.s32.totalorder %s152, %s153
      %p165 = scmp.eq.s32.totalorder %s24, 1
      %p166 = por %p164, %p165
      %p168 = scmp.ne.s32.totalorder %s153, %s167
      %p169 = scmp.eq.s32.totalorder %s24, 0
      %p170 = por %p168, %p169
      %s172 = sadd.s32 %s171, 1
      %p175 = scmp.eq.s32.totalorder %s18, 1
      %p176 = scmp.ne.s32.totalorder %s171, %s173
      %p177 = scmp.eq.s32.totalorder %s18, 0
      %p178 = por %p176, %p177
      %p179 = scmp.ne.s32.totalorder %s171, %s173
      %p180 = scmp.eq.s32.totalorder %s23, 1
      %p181 = por %p179, %p180
      %p182 = scmp.ne.s32.totalorder %s173, %s174
      %p183 = scmp.eq.s32.totalorder %s23, 0
      %p184 = por %p182, %p183
      %p185 = scmp.ne.s32.totalorder %s173, %s174
      %p186 = scmp.eq.s32.totalorder %s24, 1
      %p187 = por %p185, %p186
      %p189 = scmp.ne.s32.totalorder %s174, %s188
      %p190 = scmp.eq.s32.totalorder %s24, 0
      %p191 = por %p189, %p190
      %s192 = ssub.s32 %s25, %s37
      %s193 = ssub.s32 %s26, %s33
      %s194 = sor.u32 %s192, %s193
      %p195 = scmp.eq.s32.totalorder %s194, 0
      %s197 = sadd.s32 %s196, 1
      %s198 = scalar_select %p195, %s196, %s197
      %p201 = pneg %p195
      %p202 = scmp.eq.s32.totalorder %s18, 1
      %p203 = por %p201, %p202
      %p204 = scmp.ne.s32.totalorder %s196, %s199
      %p205 = scmp.eq.s32.totalorder %s18, 0
      %p206 = por %p204, %p205
      %p207 = scmp.ne.s32.totalorder %s196, %s199
      %p208 = scmp.eq.s32.totalorder %s23, 1
      %p209 = por %p207, %p208
      %p210 = scmp.ne.s32.totalorder %s199, %s200
      %p211 = scmp.eq.s32.totalorder %s23, 0
      %p212 = por %p210, %p211
      %p213 = scmp.ne.s32.totalorder %s199, %s200
      %p214 = scmp.eq.s32.totalorder %s24, 1
      %p215 = por %p213, %p214
      %p217 = scmp.ne.s32.totalorder %s200, %s216
      %p218 = scmp.eq.s32.totalorder %s24, 0
      %p219 = por %p217, %p218
      %p220 = scmp.le.s32.totalorder 1, %s18
      %p221 = scmp.lt.s32.totalorder %s18, 3
      %p222 = pnand %p220, %p221
      %p223 = pneg %p222
      // Predicated region
      $region9: #{tpu_custom_call.1} parent=5 // pred_check
        _
      $region10: #{tpu_custom_call.1} parent=5 // pred_check_branch
        %225 = sbr.rel (%p222) target = $region12
      $region11: #{tpu_custom_call.1} parent=5 // pred_region
        %s226 = ssub.s32 %s18, 1
        // Predicated region
        $region13: #{tpu_custom_call.1} parent=11 // pred_check
          %p227 = pneg %p79
        $region14: #{tpu_custom_call.1} parent=11 // pred_check_branch
          %229 = sbr.rel (%p227) target = $region16
        $region15: #{tpu_custom_call.1} parent=11 // pred_region
          _
        $region16: #{tpu_custom_call.1} parent=11 // pred_fallthru
          _
        // Predicated region
        $region17: #{tpu_custom_call.1} parent=11 // pred_check
          %p230 = pneg %p100
        $region18: #{tpu_custom_call.1} parent=11 // pred_check_branch
          %232 = sbr.rel (%p230) target = $region20
        $region19: #{tpu_custom_call.1} parent=11 // pred_region
          _
        $region20: #{tpu_custom_call.1} parent=11 // pred_fallthru
          _
        // Predicated region
        $region21: #{tpu_custom_call.1} parent=11 // pred_check
          %p233 = pneg %p121
        $region22: #{tpu_custom_call.1} parent=11 // pred_check_branch
          %235 = sbr.rel (%p233) target = $region24
        $region23: #{tpu_custom_call.1} parent=11 // pred_region
          _
        $region24: #{tpu_custom_call.1} parent=11 // pred_fallthru
          _
        // Predicated region
        $region25: #{tpu_custom_call.1} parent=11 // pred_check
          %p236 = pneg %p142
        $region26: #{tpu_custom_call.1} parent=11 // pred_check_branch
          %238 = sbr.rel (%p236) target = $region28
        $region27: #{tpu_custom_call.1} parent=11 // pred_region
          _
        $region28: #{tpu_custom_call.1} parent=11 // pred_fallthru
          _
        // Predicated region
        $region29: #{tpu_custom_call.1} parent=11 // pred_check
          %p239 = pneg %p163
        $region30: #{tpu_custom_call.1} parent=11 // pred_check_branch
          %241 = sbr.rel (%p239) target = $region32
        $region31: #{tpu_custom_call.1} parent=11 // pred_region
          _
        $region32: #{tpu_custom_call.1} parent=11 // pred_fallthru
          _
        // Predicated region
        $region33: #{tpu_custom_call.1} parent=11 // pred_check
          %p242 = pneg %p184
        $region34: #{tpu_custom_call.1} parent=11 // pred_check_branch
          %244 = sbr.rel (%p242) target = $region36
        $region35: #{tpu_custom_call.1} parent=11 // pred_region
          _
        $region36: #{tpu_custom_call.1} parent=11 // pred_fallthru
          _
      $region12: #{tpu_custom_call.1} parent=5 // pred_fallthru
        _
      %p245 = scmp.lt.s32.totalorder %s18, 2
      // Predicated region
      $region37: #{tpu_custom_call.1} parent=5 // pred_check
        %p246 = pneg %p245
      $region38: #{tpu_custom_call.1} parent=5 // pred_check_branch
        %248 = sbr.rel (%p246) target = $region40
      $region39: #{tpu_custom_call.1} parent=5 // pred_region
        // Predicated region
        $region41: #{tpu_custom_call.1} parent=39 // pred_check
          %p249 = pneg %p52
        $region42: #{tpu_custom_call.1} parent=39 // pred_check_branch
          %251 = sbr.rel (%p249) target = $region44
        $region43: #{tpu_custom_call.1} parent=39 // pred_region
          %s252 = smul.u32 2, %s26
          %p253 = scmp.lt.s32.totalorder %s25, 1
          %s254 = scalar_select %p253, %s25, 1
          %p255 = scmp.lt.s32.totalorder %s252, 1
          %s256 = scalar_select %p255, %s252, 1
          %s257 = smul.addr %s254, 2
          %s258 = sadd.s32 %s256, %s257
          %s259 = smul.addr %s258, 4
          %s260 = scalar_lea.vmem %s0, %s259
          %s261 = smul.u32 2, %s26
        $region44: #{tpu_custom_call.1} parent=39 // pred_fallthru
          _
      $region40: #{tpu_custom_call.1} parent=5 // pred_fallthru
        _
      %p262 = scmp.le.s32.totalorder 1, %s18
      %p263 = scmp.lt.s32.totalorder %s18, 3
      %p264 = pnand %p262, %p263
      %p265 = pneg %p264
      // Predicated region
      $region45: #{tpu_custom_call.1} parent=5 // pred_check
        _
      $region46: #{tpu_custom_call.1} parent=5 // pred_check_branch
        %267 = sbr.rel (%p264) target = $region48
      $region47: #{tpu_custom_call.1} parent=5 // pred_region
        %s268 = ssub.s32 %s18, 1
        %s269 = smul.u32 2, %s28
        %p270 = scmp.lt.s32.totalorder %s27, 1
        %s271 = scalar_select %p270, %s27, 1
        %p272 = scmp.lt.s32.totalorder %s269, 1
        %s273 = scalar_select %p272, %s269, 1
        %s274 = smul.addr %s271, 2
        %s275 = sadd.s32 %s273, %s274
        %s276 = smul.addr %s275, 4
        %s277 = scalar_lea.vmem %s0, %s276
        %p278 = pneg %p58
        %p279 = pneg %p55
        %p280 = pneg %p79
        %p281 = pneg %p76
        %p282 = pneg %p100
        %p283 = pneg %p97
        %p284 = pneg %p121
        %p285 = pneg %p118
        %p286 = pneg %p142
        %p287 = pneg %p139
        %p288 = pneg %p163
        %p289 = pneg %p160
        %p290 = pneg %p184
        %p291 = pneg %p181
        %p292 = pneg %p212
        %p293 = pneg %p209
        %s294 = sand.u32 %s199, 1
        %s295 = scalar_lea.sflag [#allocation4], %s294
        %s296 = sand.u32 %s199, 1
        %s297 = smul.addr %s296, 2
        %s298 = scalar_lea.vmem [#allocation3], %s297
        %s299 = smul.u32 2, %s28
        %p300 = scmp.lt.s32.totalorder %s27, 1
        %s301 = scalar_select %p300, %s27, 1
        %p302 = scmp.lt.s32.totalorder %s299, 1
        %s303 = scalar_select %p302, %s299, 1
        %s304 = smul.addr %s301, 2
        %s305 = sadd.s32 %s303, %s304
        %s306 = smul.addr %s305, 4
        %s307 = scalar_lea.vmem %s0, %s306
        %s308 = smul.u32 2, %s28
        %s309 = smul.u32 2, %s28
        %v310 = vld [vmem:[%s307] sm:$0xff]
        %v311 = vld [vmem:[%s1] sm:$0xff]
        %v312 = vld [vmem:[%s1 + $0x8] sm:$0xff]
        %v313 = vld [vmem:[%s1 + $0x10] sm:$0xff]
        %v314 = vld [vmem:[%s1 + $0x18] sm:$0xff]
        %v315 = vld [vmem:[%s2] sm:$0xff]
        %v316 = vld [vmem:[%s2 + $0x8] sm:$0xff]
        %v317 = vld [vmem:[%s2 + $0x10] sm:$0xff]
        %v318 = vld [vmem:[%s2 + $0x18] sm:$0xff]
        %320 = vset.pattern.permute.xlu0 0
        %321 = vperm.xlu0 %320, %v315
        %v322 = vpop.permute.xlu0 %321
        %325 = vset.pattern.permute.xlu0 0
        %326 = vperm.xlu0 %325, %v316
        %v327 = vpop.permute.xlu0 %326
        %330 = vset.pattern.permute.xlu0 0
        %331 = vperm.xlu0 %330, %v317
        %v332 = vpop.permute.xlu0 %331
        %335 = vset.pattern.permute.xlu0 0
        %336 = vperm.xlu0 %335, %v318
        %v337 = vpop.permute.xlu0 %336
        %340 = vst [vmem:[#allocation1] ss:$2 sm:$0xff] %v310
        %v341 = vld.sshfl [vmem:[#allocation1] sm:$0xff pattern:$0x75316420]
        %v342 = vld.sshfl [vmem:[#allocation1 + $0x8] sm:$0xff pattern:$0x75316420]
        %vm343 = vcmask 31744
        %v345 = vsel %vm343, %v311, 0
        %v348 = vsel %vm343, %v312, 0
        %v351 = vsel %vm343, %v313, 0
        %v354 = vsel %vm343, %v314, 0
        %vm356 = vcmask 1043456
        %v357 = vsel %vm356, %v341, 0
        %v359 = vsel %vm356, %v342, 0
        %361 = vmatpush.msra.mxu0 0.0
        %362 = vmatpush.msra.mxu0 0.0
        %363 = vmatpush.msra.mxu0 0.0
        %364 = vmatpush.msra.mxu0 0.0
        %365 = vmatpush.msra.mxu0 0.0
        %366 = vmatpush.msra.mxu0 0.0
        %367 = vmatpush.msra.mxu0 0.0
        %368 = vmatpush.msra.mxu0 0.0
        %369 = vmatpush.msra.mxu0 0.0
        %370 = vmatpush.msra.mxu0 0.0
        %371 = vmatpush.msra.mxu0 0.0
        %372 = vmatpush.msra.mxu0 0.0
        %373 = vmatpush.msra.mxu0 0.0
        %374 = vmatpush.msra.mxu0 0.0
        %375 = vmatpush.msra.mxu0 0.0
        %376 = vmatpush.msra.mxu0 %v357
        %377 = vmatmul.f32.gmra.mxu0 %v345
        %v378 = vpop.f32.mrf.mxu0
        %v379 = vadd.f32 %v322, %v378
        %380 = vmatmul.f32.gmra.mxu0 %v348
        %v381 = vpop.f32.mrf.mxu0
        %v382 = vadd.f32 %v327, %v381
        %383 = vmatmul.f32.gmra.mxu0 %v351
        %v384 = vpop.f32.mrf.mxu0
        %v385 = vadd.f32 %v332, %v384
        %386 = vmatmul.f32.gmra.mxu0 %v354
        %v387 = vpop.f32.mrf.mxu0
        %v388 = vadd.f32 %v337, %v387
        %389 = vdwg.mxu0
        %390 = vmatpush.msra.mxu0 0.0
        %391 = vmatpush.msra.mxu0 0.0
        %392 = vmatpush.msra.mxu0 0.0
        %393 = vmatpush.msra.mxu0 0.0
        %394 = vmatpush.msra.mxu0 0.0
        %395 = vmatpush.msra.mxu0 0.0
        %396 = vmatpush.msra.mxu0 0.0
        %397 = vmatpush.msra.mxu0 0.0
        %398 = vmatpush.msra.mxu0 0.0
        %399 = vmatpush.msra.mxu0 0.0
        %400 = vmatpush.msra.mxu0 0.0
        %401 = vmatpush.msra.mxu0 0.0
        %402 = vmatpush.msra.mxu0 0.0
        %403 = vmatpush.msra.mxu0 0.0
        %404 = vmatpush.msra.mxu0 0.0
        %405 = vmatpush.msra.mxu0 %v359
        %406 = vmatmul.f32.gmra.mxu0 %v345
        %v407 = vpop.f32.mrf.mxu0
        %v408 = vadd.f32 %v322, %v407
        %409 = vmatmul.f32.gmra.mxu0 %v348
        %v410 = vpop.f32.mrf.mxu0
        %v411 = vadd.f32 %v327, %v410
        %412 = vmatmul.f32.gmra.mxu0 %v351
        %v413 = vpop.f32.mrf.mxu0
        %v414 = vadd.f32 %v332, %v413
        %415 = vmatmul.f32.gmra.mxu0 %v354
        %v416 = vpop.f32.mrf.mxu0
        %v417 = vadd.f32 %v337, %v416
        %418 = vdwg.mxu0
        %vm419 = vcmp.gt.f32.partialorder %v379, 0.0
        %vm420 = vcmp.gt.f32.partialorder %v408, 0.0
        %vm421 = vcmp.gt.f32.partialorder %v382, 0.0
        %vm422 = vcmp.gt.f32.partialorder %v411, 0.0
        %vm423 = vcmp.gt.f32.partialorder %v385, 0.0
        %vm424 = vcmp.gt.f32.partialorder %v414, 0.0
        %vm425 = vcmp.gt.f32.partialorder %v388, 0.0
        %vm426 = vcmp.gt.f32.partialorder %v417, 0.0
        %v427 = vmul.f32 %v379, 0.01
        %v428 = vmul.f32 %v408, 0.01
        %v429 = vmul.f32 %v382, 0.01
        %v430 = vmul.f32 %v411, 0.01
        %v431 = vmul.f32 %v385, 0.01
        %v432 = vmul.f32 %v414, 0.01
        %v433 = vmul.f32 %v388, 0.01
        %v434 = vmul.f32 %v417, 0.01
        %v435 = vsel %vm419, %v379, %v427
        %v436 = vsel %vm420, %v408, %v428
        %v437 = vsel %vm421, %v382, %v429
        %v438 = vsel %vm422, %v411, %v430
        %v439 = vsel %vm423, %v385, %v431
        %v440 = vsel %vm424, %v414, %v432
        %v441 = vsel %vm425, %v388, %v433
        %v442 = vsel %vm426, %v417, %v434
        %v443 = vld [vmem:[%s3] sm:$0xff]
        %v444 = vld [vmem:[%s3 + $0x8] sm:$0xff]
        %v445 = vld [vmem:[%s3 + $0x10] sm:$0xff]
        %v446 = vld [vmem:[%s3 + $0x18] sm:$0xff]
        %v447 = vld [vmem:[%s4] sm:$0xff]
        %v448 = vld [vmem:[%s4 + $0x8] sm:$0xff]
        %v449 = vld [vmem:[%s4 + $0x10] sm:$0xff]
        %v450 = vld [vmem:[%s4 + $0x18] sm:$0xff]
        %452 = vset.pattern.permute.xlu0 0
        %453 = vperm.xlu0 %452, %v447
        %v454 = vpop.permute.xlu0 %453
        %457 = vset.pattern.permute.xlu0 0
        %458 = vperm.xlu0 %457, %v448
        %v459 = vpop.permute.xlu0 %458
        %462 = vset.pattern.permute.xlu0 0
        %463 = vperm.xlu0 %462, %v449
        %v464 = vpop.permute.xlu0 %463
        %467 = vset.pattern.permute.xlu0 0
        %468 = vperm.xlu0 %467, %v450
        %v469 = vpop.permute.xlu0 %468
        %vm471 = vcmask 261120
        %v473 = vsel %vm471, %v443, 0
        %v476 = vsel %vm471, %v444, 0
        %v479 = vsel %vm471, %v445, 0
        %v482 = vsel %vm471, %v446, 0
        %484 = vmatpush.msra.mxu0 0.0
        %485 = vmatpush.msra.mxu0 0.0
        %486 = vmatpush.msra.mxu0 0.0
        %487 = vmatpush.msra.mxu0 0.0
        %488 = vmatpush.msra.mxu0 0.0
        %489 = vmatpush.msra.mxu0 0.0
        %490 = vmatpush.msra.mxu0 0.0
        %491 = vmatpush.msra.mxu0 0.0
        %492 = vmatpush.msra.mxu0 0.0
        %493 = vmatpush.msra.mxu0 0.0
        %494 = vmatpush.msra.mxu0 0.0
        %495 = vmatpush.msra.mxu0 0.0
        %496 = vmatpush.msra.mxu0 %v441
        %497 = vmatpush.msra.mxu0 %v439
        %498 = vmatpush.msra.mxu0 %v437
        %499 = vmatpush.msra.mxu0 %v435
        %500 = vmatmul.f32.gmra.mxu0 %v473
        %v501 = vpop.f32.mrf.mxu0
        %v502 = vadd.f32 %v454, %v501
        %503 = vmatmul.f32.gmra.mxu0 %v476
        %v504 = vpop.f32.mrf.mxu0
        %v505 = vadd.f32 %v459, %v504
        %506 = vmatmul.f32.gmra.mxu0 %v479
        %v507 = vpop.f32.mrf.mxu0
        %v508 = vadd.f32 %v464, %v507
        %509 = vmatmul.f32.gmra.mxu0 %v482
        %v510 = vpop.f32.mrf.mxu0
        %v511 = vadd.f32 %v469, %v510
        %512 = vdwg.mxu0
        %513 = vmatpush.msra.mxu0 0.0
        %514 = vmatpush.msra.mxu0 0.0
        %515 = vmatpush.msra.mxu0 0.0
        %516 = vmatpush.msra.mxu0 0.0
        %517 = vmatpush.msra.mxu0 0.0
        %518 = vmatpush.msra.mxu0 0.0
        %519 = vmatpush.msra.mxu0 0.0
        %520 = vmatpush.msra.mxu0 0.0
        %521 = vmatpush.msra.mxu0 0.0
        %522 = vmatpush.msra.mxu0 0.0
        %523 = vmatpush.msra.mxu0 0.0
        %524 = vmatpush.msra.mxu0 0.0
        %525 = vmatpush.msra.mxu0 %v442
        %526 = vmatpush.msra.mxu0 %v440
        %527 = vmatpush.msra.mxu0 %v438
        %528 = vmatpush.msra.mxu0 %v436
        %529 = vmatmul.f32.gmra.mxu0 %v473
        %v530 = vpop.f32.mrf.mxu0
        %v531 = vadd.f32 %v454, %v530
        %532 = vmatmul.f32.gmra.mxu0 %v476
        %v533 = vpop.f32.mrf.mxu0
        %v534 = vadd.f32 %v459, %v533
        %535 = vmatmul.f32.gmra.mxu0 %v479
        %v536 = vpop.f32.mrf.mxu0
        %v537 = vadd.f32 %v464, %v536
        %538 = vmatmul.f32.gmra.mxu0 %v482
        %v539 = vpop.f32.mrf.mxu0
        %v540 = vadd.f32 %v469, %v539
        %541 = vdwg.mxu0
        %vm542 = vcmp.gt.f32.partialorder %v502, 0.0
        %vm543 = vcmp.gt.f32.partialorder %v531, 0.0
        %vm544 = vcmp.gt.f32.partialorder %v505, 0.0
        %vm545 = vcmp.gt.f32.partialorder %v534, 0.0
        %vm546 = vcmp.gt.f32.partialorder %v508, 0.0
        %vm547 = vcmp.gt.f32.partialorder %v537, 0.0
        %vm548 = vcmp.gt.f32.partialorder %v511, 0.0
        %vm549 = vcmp.gt.f32.partialorder %v540, 0.0
        %v550 = vmul.f32 %v502, 0.01
        %v551 = vmul.f32 %v531, 0.01
        %v552 = vmul.f32 %v505, 0.01
        %v553 = vmul.f32 %v534, 0.01
        %v554 = vmul.f32 %v508, 0.01
        %v555 = vmul.f32 %v537, 0.01
        %v556 = vmul.f32 %v511, 0.01
        %v557 = vmul.f32 %v540, 0.01
        %v558 = vsel %vm542, %v502, %v550
        %v559 = vsel %vm543, %v531, %v551
        %v560 = vsel %vm544, %v505, %v552
        %v561 = vsel %vm545, %v534, %v553
        %v562 = vsel %vm546, %v508, %v554
        %v563 = vsel %vm547, %v537, %v555
        %v564 = vsel %vm548, %v511, %v556
        %v565 = vsel %vm549, %v540, %v557
        %v566 = vld [vmem:[%s5] sm:$0x1]
        %v567 = vld [vmem:[#allocation2] sm:$0x1]
        %569 = vset.pattern.permute.xlu0 0
        %570 = vperm.xlu0 %569, %v567
        %v571 = vpop.permute.xlu0 %570
        %v573 = vperm.slane %v571, 0
        %v575 = vsel %vm471, %v566, 0
        %577 = vmatpush.msra.mxu0 0.0
        %578 = vmatpush.msra.mxu0 0.0
        %579 = vmatpush.msra.mxu0 0.0
        %580 = vmatpush.msra.mxu0 0.0
        %581 = vmatpush.msra.mxu0 0.0
        %582 = vmatpush.msra.mxu0 0.0
        %583 = vmatpush.msra.mxu0 0.0
        %584 = vmatpush.msra.mxu0 0.0
        %585 = vmatpush.msra.mxu0 0.0
        %586 = vmatpush.msra.mxu0 0.0
        %587 = vmatpush.msra.mxu0 0.0
        %588 = vmatpush.msra.mxu0 0.0
        %589 = vmatpush.msra.mxu0 %v564
        %590 = vmatpush.msra.mxu0 %v562
        %591 = vmatpush.msra.mxu0 %v560
        %592 = vmatpush.msra.mxu0 %v558
        %593 = vmatmul.f32.gmra.mxu0 %v575
        %v594 = vpop.f32.mrf.mxu0
        %v595 = vadd.f32 %v573, %v594
        %596 = vdwg.mxu0
        %597 = vmatpush.msra.mxu0 0.0
        %598 = vmatpush.msra.mxu0 0.0
        %599 = vmatpush.msra.mxu0 0.0
        %600 = vmatpush.msra.mxu0 0.0
        %601 = vmatpush.msra.mxu0 0.0
        %602 = vmatpush.msra.mxu0 0.0
        %603 = vmatpush.msra.mxu0 0.0
        %604 = vmatpush.msra.mxu0 0.0
        %605 = vmatpush.msra.mxu0 0.0
        %606 = vmatpush.msra.mxu0 0.0
        %607 = vmatpush.msra.mxu0 0.0
        %608 = vmatpush.msra.mxu0 0.0
        %609 = vmatpush.msra.mxu0 %v565
        %610 = vmatpush.msra.mxu0 %v563
        %611 = vmatpush.msra.mxu0 %v561
        %612 = vmatpush.msra.mxu0 %v559
        %613 = vmatmul.f32.gmra.mxu0 %v575
        %v614 = vpop.f32.mrf.mxu0
        %v615 = vadd.f32 %v573, %v614
        %616 = vdwg.mxu0
        %v619 = vrot.slane %v615, 7
        %vm620 = vcmask 1040384
        %v621 = vsel %vm620, %v595, %v619
        %v623 = vlaneseq
        %vm624 = vcmp.ge.s32.totalorder %v623, 0
        %vm625 = vcmp.lt.s32.totalorder %v623, 256
        %vm626 = vmand %vm624, %vm625
        %627 = vst.msk [vmem:[%s298] sm:$0x3] %vm626, %v621
        %s628 = sand.u32 %s199, 1
        %s629 = scalar_lea.sflag [#allocation4], %s628
        %s630 = sand.u32 %s199, 1
        %s631 = smul.addr %s630, 2
        %s632 = scalar_lea.vmem [#allocation3], %s631
        // Predicated region
        $region49: #{tpu_custom_call.1} parent=47 // pred_check
          %p633 = pneg %p209
        $region50: #{tpu_custom_call.1} parent=47 // pred_check_branch
          %635 = sbr.rel (%p633) target = $region52
        $region51: #{tpu_custom_call.1} parent=47 // pred_region
          %s636 = smul.u32 2, %s28
          %638 = vsyncadd %s629, 0
          %s639 = smul.addr %s27, 2
          %s640 = sadd.s32 %s636, %s639
          %s641 = scalar_lea.hbm %s7, %s640
          %s643 = sshll.u32 %s632, 4
          %s644 = int_to_ptr.vmem [resolvable:$true] %s643
          %s645 = sshll.u32 %s641, 4
          %s646 = int_to_ptr.hbm [resolvable:$true] %s645
          %648 = dma.vmem_to_hbm [thread:$0]  %s644, 32, %s646, %s629
        $region52: #{tpu_custom_call.1} parent=47 // pred_fallthru
          _
      $region48: #{tpu_custom_call.1} parent=5 // pred_fallthru
        _
      %p649 = scmp.le.s32.totalorder 2, %s18
      // Predicated region
      $region53: #{tpu_custom_call.1} parent=5 // pred_check
        %p650 = pneg %p649
      $region54: #{tpu_custom_call.1} parent=5 // pred_check_branch
        %652 = sbr.rel (%p650) target = $region56
      $region55: #{tpu_custom_call.1} parent=5 // pred_region
        %s653 = ssub.s32 %s18, 2
        // Predicated region
        $region57: #{tpu_custom_call.1} parent=55 // pred_check
          %p654 = pneg %p215
        $region58: #{tpu_custom_call.1} parent=55 // pred_check_branch
          %656 = sbr.rel (%p654) target = $region60
        $region59: #{tpu_custom_call.1} parent=55 // pred_region
          %s657 = sand.u32 %s200, 1
          %s658 = scalar_lea.sflag [#allocation4], %s657
          %s659 = sand.u32 %s200, 1
          %s660 = smul.addr %s659, 2
          %s661 = scalar_lea.vmem [#allocation3], %s660
          %663 = dma.done %s658, 32
        $region60: #{tpu_custom_call.1} parent=55 // pred_fallthru
          _
      $region56: #{tpu_custom_call.1} parent=5 // pred_fallthru
        _
    $region6: #{tpu_custom_call.1} parent=1 // loop_footer
      %s22 = sadd.s32 1, %s18
    $region7: #{tpu_custom_call.1} parent=1 // loop_footer_branch
      %17 = sbr.rel target = $region3
    $region8: #{tpu_custom_call.1} parent=1 // loop_exit
      _
    %664 = vsyncpa [#allocation4], 1
    %s665 = scalar_lea.sflag [#allocation4], 1
    %666 = vsyncpa %s665, 1

</llo_original>
